<compile_context>
chip_gen: v7x
topology: tpu7x:2x2x1
jax: 0.10.0
libtpu: 0.0.40
codegen_flags: <defaults>
</compile_context>

<pallas_src>
import functools

import jax
import jax.numpy as jnp
from jax.experimental import pallas as pl
from jax.experimental.pallas import tpu as pltpu


# ---------------------------------------------------------------------------
# Path A: moderate num_classes -> one-hot MXU gather, centers resident in VMEM.
# ---------------------------------------------------------------------------
def _center_loss_onehot_kernel(x_ref, labels_ref, c_ref, dist_ref, *, batch_size):
    # x_ref:      (TB, D) native dtype  -- streamed batch tile
    # labels_ref: (TB, 1) int32         -- streamed labels tile
    # c_ref:      (C, D)  float32       -- resident centers (constant index_map)
    # dist_ref:   (TB, 1) float32       -- per-row clamped squared distance
    i = pl.program_id(0)

    x = x_ref[...].astype(jnp.float32)           # upcast after the (possibly bf16) load
    c = c_ref[...]
    labels = labels_ref[...]

    tb = x.shape[0]
    num_classes = c.shape[0]

    # One-hot of each row's own class (VPU filler under the MXU gather).
    class_ids = jax.lax.broadcasted_iota(jnp.int32, (tb, num_classes), 1)
    onehot = (labels == class_ids).astype(jnp.float32)

    # g[r] == centers[labels[r]] exactly (single non-zero term per output row).
    g = jnp.dot(onehot, c, preferred_element_type=jnp.float32)   # (TB, D)

    diff = x - g
    sq = jnp.sum(diff * diff, axis=1, keepdims=True)             # (TB, 1)
    sq = jnp.clip(sq, 1e-12, 1e12)

    # Mask rows past the true batch: ragged last tile reads unspecified data via
    # Pallas boundary blocks; jnp.where is NaN-safe.
    row_ids = i * tb + jax.lax.broadcasted_iota(jnp.int32, (tb, 1), 0)
    dist_ref[...] = jnp.where(row_ids < batch_size, sq, 0.0)


# ---------------------------------------------------------------------------
# Path B: large num_classes -> per-row DMA gather from HBM-resident centers,
# labels scalar-prefetched into SMEM.
# ---------------------------------------------------------------------------
def _center_loss_gather_kernel(labels_ref, x_ref, c_hbm, dist_ref, gbuf, sem, *,
                               batch_size, num_classes, block_b):
    # labels_ref: (B,)    int32 SMEM    -- scalar-prefetched labels
    # x_ref:      (TB, D) native dtype  -- streamed batch tile
    # c_hbm:      (C, D)  float32 HBM   -- untouched by the pipeline
    # dist_ref:   (TB, 1) float32
    # gbuf:       (TB, D) float32 VMEM  -- gathered own-class center rows
    # sem:        (1,)    DMA semaphore (shared by the equal-sized row copies)
    i = pl.program_id(0)

    # Issue one row DMA per sample in this tile: centers[label] -> gbuf[r].
    @pl.loop(0, block_b)
    def _issue(r):
        row = jnp.minimum(i * block_b + r, batch_size - 1)   # clamp ragged tail
        lab = jnp.clip(labels_ref[row], 0, num_classes - 1)  # guard garbage labels
        pltpu.make_async_copy(c_hbm.at[lab], gbuf.at[r], sem.at[0]).start()

    # Drain: all copies share one semaphore and have identical size, so
    # block_b one-row waits retire them all.
    @pl.loop(0, block_b)
    def _drain(r):
        pltpu.make_async_copy(c_hbm.at[0], gbuf.at[r], sem.at[0]).wait()

    x = x_ref[...].astype(jnp.float32)
    g = gbuf[...]
    diff = x - g
    sq = jnp.sum(diff * diff, axis=1, keepdims=True)
    sq = jnp.clip(sq, 1e-12, 1e12)

    row_ids = i * block_b + jax.lax.broadcasted_iota(jnp.int32, (block_b, 1), 0)
    dist_ref[...] = jnp.where(row_ids < batch_size, sq, 0.0)


# ---------------------------------------------------------------------------
# Wrapper
# ---------------------------------------------------------------------------
def _vmem_budget_bytes():
    """Per-core VMEM budget: ~75% of physical, capped at 100 MiB.

    v5e/v6e have 128 MiB/core (-> ~96-100 MiB usable), v7x has 64 MiB/core
    (-> ~48 MiB); fall back to the v7x-safe value if the query fails."""
    cap = 64 * 1024 * 1024
    try:
        cap = int(pltpu.get_tpu_info().vmem_capacity_bytes)
    except Exception:
        pass
    return int(min(0.75 * cap, 100 * 1024 * 1024))


def center_loss(x, centers, labels, *, block_b=None, use_gather=None):
    """CenterLoss forward: mean_i clamp(||x_i - centers[labels_i]||^2, 1e-12, 1e12).

    x: (B, D) float (streamed in native dtype), centers: (C, D) float,
    labels: (B,) int.  Returns a scalar float32 loss.
    """
    assert x.ndim == 2 and centers.ndim == 2
    B, D = x.shape
    C, Dc = centers.shape
    assert D == Dc, "feature dims of x and centers must match"

    if centers.dtype != jnp.float32:
        centers = centers.astype(jnp.float32)
    labels = labels.reshape(B).astype(jnp.int32)

    budget = _vmem_budget_bytes()

    # Large-C regime: a (double-buffered) resident centers block would blow VMEM
    # and the one-hot matmul spends MXU flops on zero-valued work -> DMA gather.
    if use_gather is None:
        use_gather = (2 * C * D * 4) > min(8 * 1024 * 1024, budget // 4)

    x_bytes = x.dtype.itemsize
    if use_gather:
        # per row: x double-buffer + gathered-center row + diff temp
        per_row = 2 * D * x_bytes + 4 * D + 4 * D + 16
        fixed = 2 * 1024 * 1024
        tb_cap = 512                     # bound outstanding row DMAs per tile
    else:
        # per row: x double-buffer + labels + one-hot + (g, diff) temps
        per_row = 2 * D * x_bytes + 4 * C + 8 * D + 16
        fixed = 2 * C * D * 4 + 2 * 1024 * 1024   # resident centers (2 pipeline bufs)
        tb_cap = 1024

    tb = max(1, (budget - fixed) // per_row)
    tb = min(tb, tb_cap)
    if block_b is not None:
        tb = min(tb, block_b)
    align = 8 if x_bytes >= 4 else 16    # sublane packing: (8,128) f32 / (16,128) bf16
    if tb >= B:
        tb = B                           # full-dim block is always legal
    else:
        tb = max(align, (tb // align) * align)
    nb = pl.cdiv(B, tb)

    cparams = pltpu.CompilerParams(
        dimension_semantics=("parallel",),   # independent tiles: v7x uses both TCs
        vmem_limit_bytes=budget,
    )
    out_shape = jax.ShapeDtypeStruct((nb * tb, 1), jnp.float32)

    if use_gather:
        dists = pl.pallas_call(
            functools.partial(_center_loss_gather_kernel, batch_size=B,
                              num_classes=C, block_b=tb),
            out_shape=out_shape,
            grid_spec=pltpu.PrefetchScalarGridSpec(
                num_scalar_prefetch=1,                                # labels -> SMEM
                grid=(nb,),
                in_specs=[
                    pl.BlockSpec((tb, D), lambda i, lbl: (i, 0)),     # x: streamed
                    pl.BlockSpec(memory_space=pl.ANY),                # centers: HBM
                ],
                out_specs=pl.BlockSpec((tb, 1), lambda i, lbl: (i, 0)),
                scratch_shapes=[
                    pltpu.VMEM((tb, D), jnp.float32),                 # gathered rows
                    pltpu.SemaphoreType.DMA((1,)),
                ],
            ),
            compiler_params=cparams,
        )(labels, x, centers)
    else:
        dists = pl.pallas_call(
            functools.partial(_center_loss_onehot_kernel, batch_size=B),
            out_shape=out_shape,
            grid_spec=pltpu.PrefetchScalarGridSpec(
                num_scalar_prefetch=0,
                grid=(nb,),
                in_specs=[
                    pl.BlockSpec((tb, D), lambda i: (i, 0)),          # x: streamed
                    pl.BlockSpec((tb, 1), lambda i: (i, 0)),          # labels: streamed
                    pl.BlockSpec((C, D), lambda i: (0, 0)),           # centers: resident
                ],
                out_specs=pl.BlockSpec((tb, 1), lambda i: (i, 0)),
            ),
            compiler_params=cparams,
        )(x, labels.reshape(B, 1), centers)

    # Per-row squared distances (padded rows are zero); mean over the true batch.
    return jnp.sum(dists) * (1.0 / B)


if __name__ == "__main__":
    def reference(x, centers, labels):
        # Pure-JAX mirror of the PyTorch formulation.
        xf = x.astype(jnp.float32)
        cf = centers.astype(jnp.float32)
        b = xf.shape[0]
        distmat = (jnp.sum(xf ** 2, axis=1, keepdims=True)
                   + jnp.sum(cf ** 2, axis=1)[None, :]
                   - 2.0 * jnp.dot(xf, cf.T, precision=jax.lax.Precision.HIGHEST))
        sel = distmat[jnp.arange(b), labels]
        return jnp.mean(jnp.clip(sel, 1e-12, 1e12))

    def check(got, want, name):
        got = jax.block_until_ready(got)
        assert jnp.allclose(got, want, rtol=1e-4, atol=1e-4), (name, got, want)

    root = jax.random.PRNGKey(0)
    k = jax.random.split(root, 8)

    # 1) Module-sized shapes (batch=16, feat_dim=32, num_classes=10):
    #    single-tile one-hot MXU path.
    B, D, C = 16, 32, 10
    x = jax.random.normal(k[0], (B, D), dtype=jnp.float32)
    centers = jax.random.normal(k[1], (C, D), dtype=jnp.float32)
    labels = jax.random.randint(k[2], (B,), 0, C, dtype=jnp.int32)
    check(center_loss(x, centers, labels), reference(x, centers, labels),
          "onehot/single-tile")

    # 2) Ragged multi-tile one-hot path (B % TB != 0 -> boundary-block masking).
    B2 = 21
    x2 = jax.random.normal(k[3], (B2, D), dtype=jnp.float32)
    l2 = jax.random.randint(k[4], (B2,), 0, C, dtype=jnp.int32)
    check(center_loss(x2, centers, l2, block_b=8), reference(x2, centers, l2),
          "onehot/ragged")

    # 3) bf16-streamed features (native-dtype streaming, f32 math in-kernel).
    x_bf16 = x.astype(jnp.bfloat16)
    check(center_loss(x_bf16, centers, labels), reference(x_bf16, centers, labels),
          "onehot/bf16")

    # 4) Forced DMA-gather (large-C) path, ragged multi-tile.
    B4, D4, C4 = 21, 128, 40
    x4 = jax.random.normal(k[5], (B4, D4), dtype=jnp.float32)
    c4 = jax.random.normal(k[6], (C4, D4), dtype=jnp.float32)
    l4 = jax.random.randint(k[7], (B4,), 0, C4, dtype=jnp.int32)
    check(center_loss(x4, c4, l4, block_b=8, use_gather=True),
          reference(x4, c4, l4), "gather/ragged")

    print("KERNEL_OK")
</pallas_src>

<mosaic_0001>
module attributes {stable_mosaic.version = 11 : i64} {
  func.func @_center_loss_onehot_kernel(%arg0: i32, %arg1: memref<16x32xf32, #tpu.memory_space<vmem>>, %arg2: memref<16x1xi32, #tpu.memory_space<vmem>>, %arg3: memref<10x32xf32, #tpu.memory_space<vmem>>, %arg4: memref<16x1xf32, #tpu.memory_space<vmem>>) attributes {dimension_semantics = [#tpu.dimension_semantics<parallel>], iteration_bounds = array<i64: 1>, scalar_prefetch = 0 : i64, scratch_operands = 0 : i64, tpu.core_type = #tpu.core_type<tc>, window_params = [{transform_indices = @transform_0, window_bounds = array<i64: 16, 32>}, {transform_indices = @transform_1, window_bounds = array<i64: 16, 1>}, {pipeline_mode = #tpu.pipeline_mode<synchronous>, transform_indices = @transform_2, window_bounds = array<i64: 10, 32>}, {transform_indices = @transform_3, window_bounds = array<i64: 16, 1>}]} {
    %c0 = arith.constant 0 : index
    %c0_0 = arith.constant 0 : index
    %0 = vector.load %arg1[%c0, %c0_0] : memref<16x32xf32, #tpu.memory_space<vmem>>, vector<16x32xf32>
    %c0_1 = arith.constant 0 : index
    %c0_2 = arith.constant 0 : index
    %1 = vector.load %arg3[%c0_1, %c0_2] : memref<10x32xf32, #tpu.memory_space<vmem>>, vector<10x32xf32>
    %c0_3 = arith.constant 0 : index
    %c0_4 = arith.constant 0 : index
    %2 = vector.load %arg2[%c0_3, %c0_4] : memref<16x1xi32, #tpu.memory_space<vmem>>, vector<16x1xi32>
    %3 = tpu.iota {dimensions = array<i32: 1>} : vector<16x10xi32>
    %4 = vector.broadcast %2 : vector<16x1xi32> to vector<16x10xi32>
    %5 = arith.cmpi eq, %4, %3 : vector<16x10xi32>
    %6 = arith.extui %5 : vector<16x10xi1> to vector<16x10xi32>
    %7 = arith.sitofp %6 : vector<16x10xi32> to vector<16x10xf32>
    %cst = arith.constant dense<0.000000e+00> : vector<16x32xf32>
    %8 = tpu.matmul %7, %1, %cst {dimension_numbers = #tpu.dot_dimension_numbers<[1], [0], [0], [1], [0, 0, 1, 1], [], []>} : vector<16x10xf32>, vector<10x32xf32>, vector<16x32xf32> -> vector<16x32xf32>
    %9 = arith.subf %0, %8 : vector<16x32xf32>
    %10 = arith.mulf %9, %9 : vector<16x32xf32>
    %cst_5 = arith.constant dense<0.000000e+00> : vector<16xf32>
    %11 = vector.multi_reduction <add>, %10, %cst_5 [1] : vector<16x32xf32> to vector<16xf32>
    %12 = vector.shape_cast %11 : vector<16xf32> to vector<16x1xf32>
    %cst_6 = arith.constant 9.99999996E-13 : f32
    %cst_7 = arith.constant 9.99999995E+11 : f32
    %13 = vector.broadcast %cst_6 : f32 to vector<16x1xf32>
    %14 = arith.maximumf %13, %12 : vector<16x1xf32>
    %15 = vector.broadcast %cst_7 : f32 to vector<16x1xf32>
    %16 = arith.minimumf %15, %14 : vector<16x1xf32>
    %c16_i32 = arith.constant 16 : i32
    %17 = arith.muli %arg0, %c16_i32 : i32
    %18 = tpu.iota {dimensions = array<i32: 0>} : vector<16x1xi32>
    %19 = vector.broadcast %17 : i32 to vector<16x1xi32>
    %20 = arith.addi %19, %18 : vector<16x1xi32>
    %c16_i32_8 = arith.constant 16 : i32
    %21 = vector.broadcast %c16_i32_8 : i32 to vector<16x1xi32>
    %22 = arith.cmpi slt, %20, %21 : vector<16x1xi32>
    %cst_9 = arith.constant 0.000000e+00 : f32
    %23 = vector.broadcast %cst_9 : f32 to vector<16x1xf32>
    %24 = arith.select %22, %16, %23 : vector<16x1xi1>, vector<16x1xf32>
    %c0_10 = arith.constant 0 : index
    %c0_11 = arith.constant 0 : index
    %25 = vector.load %arg4[%c0_10, %c0_11] : memref<16x1xf32, #tpu.memory_space<vmem>>, vector<16x1xf32>
    tpu.vector_store %arg4[%c0_10, %c0_11], %24 {strides = array<i32>} : memref<16x1xf32, #tpu.memory_space<vmem>>, vector<16x1xf32>,
    return
  }
  func.func @transform_0(%arg0: i32) -> (i32, i32) {
    %c0_i32 = arith.constant 0 : i32
    %c0_i32_0 = arith.constant 0 : i32
    return %arg0, %c0_i32 : i32, i32
  }
  func.func @transform_1(%arg0: i32) -> (i32, i32) {
    %c0_i32 = arith.constant 0 : i32
    %c0_i32_0 = arith.constant 0 : i32
    return %arg0, %c0_i32 : i32, i32
  }
  func.func @transform_2(%arg0: i32) -> (i32, i32) {
    %c0_i32 = arith.constant 0 : i32
    %c0_i32_0 = arith.constant 0 : i32
    %c0_i32_1 = arith.constant 0 : i32
    return %c0_i32, %c0_i32_0 : i32, i32
  }
  func.func @transform_3(%arg0: i32) -> (i32, i32) {
    %c0_i32 = arith.constant 0 : i32
    %c0_i32_0 = arith.constant 0 : i32
    return %arg0, %c0_i32 : i32, i32
  }
}

</mosaic_0001>

<llo_original>
// kernel: tpu_custom_call.1
$region0: #{tpu_custom_call.1}
  #allocation0 [shape = 'u32[]', space=smem, size = 0x4, offset = 0x4, fixed_abs, tag = 'smem constant byte address 0x4 - core index']
  #allocation1 [shape = 'u32[144,128]{1,0:T(1,128)}', space=vmem, size = 0x12000, scoped, tag = 'internal scratch']
  %s0 = inlined_call_operand.vmem [shape: f32[16,32], index: 0, kind: input, shape index: {}]
  %s1 = inlined_call_operand.vmem [shape: s32[16,1], index: 1, kind: input, shape index: {}]
  %s2 = inlined_call_operand.hbm [shape: f32[10,32], index: 2, kind: input, shape index: {}]
  %s3 = inlined_call_operand.vmem [shape: f32[16,1], index: 3, kind: output, shape index: {}]
  %s4 = sld [smem:[#allocation0]]
  $region26: #{tpu_custom_call.1} parent=0
    _
  %s6 = ssub.s32 1, %s4
  %s7 = scalar_select 0, %s6, %s4
  $region1: #{tpu_custom_call.1} parent=0
    #allocation2 [shape = 'u8[8192]{0}', space=vmem, size = 0x2000, scoped, tag = 'input window, operand 2, single buffered']
    #allocation3 [shape = 's32[1]{0}', space=sflag, size = 0x4, scoped, tag = 'scoped memory for tpu_custom_call.1']
    %8 = vsyncpa [#allocation3], 0
    // Predicated region
    $region2: #{tpu_custom_call.1} parent=1 // pred_check
      _
    $region3: #{tpu_custom_call.1} parent=1 // pred_check_branch
      %10 = sbr.rel (0) target = $region5
    $region4: #{tpu_custom_call.1} parent=1 // pred_region
      _
    $region5: #{tpu_custom_call.1} parent=1 // pred_fallthru
      _
    // Predicated region
    $region6: #{tpu_custom_call.1} parent=1 // pred_check
      _
    $region7: #{tpu_custom_call.1} parent=1 // pred_check_branch
      %12 = sbr.rel (0) target = $region9
    $region8: #{tpu_custom_call.1} parent=1 // pred_region
      _
    $region9: #{tpu_custom_call.1} parent=1 // pred_fallthru
      _
    // Predicated region
    $region10: #{tpu_custom_call.1} parent=1 // pred_check
      _
    $region11: #{tpu_custom_call.1} parent=1 // pred_check_branch
      %14 = sbr.rel (0) target = $region13
    $region12: #{tpu_custom_call.1} parent=1 // pred_region
      %s16 = ssub.s32 256, 256
      %17 = vsyncadd [#allocation3], %s16
      %s18 = sshll.u32 [#allocation2], 4
      %s19 = int_to_ptr.vmem [resolvable:$true] %s18
      %24 = dma.hbm_to_vmem [thread:$0]  %s2, 256, %s19, [#allocation3], 128, 128, 8
    $region13: #{tpu_custom_call.1} parent=1 // pred_fallthru
      _
    // Predicated region
    $region14: #{tpu_custom_call.1} parent=1 // pred_check
      _
    $region15: #{tpu_custom_call.1} parent=1 // pred_check_branch
      %26 = sbr.rel (0) target = $region17
    $region16: #{tpu_custom_call.1} parent=1 // pred_region
      %27 = dma.done [#allocation3], 256
    $region17: #{tpu_custom_call.1} parent=1 // pred_fallthru
      _
    %v28 = vld [vmem:[%s0] sm:$0xff]
    %v29 = vld [vmem:[%s0 + $0x8] sm:$0xff]
    %v30 = vld [vmem:[#allocation2] sm:$0xff]
    %v31 = vld [vmem:[#allocation2 + $0x8] sm:$0x3]
    %v32 = vld [vmem:[%s1] sm:$0xff]
    %v33 = vld [vmem:[%s1 + $0x8] sm:$0xff]
    %v34 = vlaneseq
    %v35 = vand.u32 %v34, 127
    %36 = vset.pattern.permute.xlu0 0
    %37 = vperm.xlu0 %36, %v32
    %v38 = vpop.permute.xlu0 %37
    %39 = vset.pattern.permute.xlu0 0
    %40 = vperm.xlu0 %39, %v33
    %v41 = vpop.permute.xlu0 %40
    %vm42 = vcmp.eq.s32.totalorder %v38, %v35
    %vm43 = vcmp.eq.s32.totalorder %v41, %v35
    %v44 = vsel %vm42, 1, 0
    %v45 = vsel %vm43, 1, 0
    %v46 = vcvt.s32.f32 %v44
    %v47 = vcvt.s32.f32 %v45
    %vm48 = vcmask 80896
    %v50 = vsel %vm48, %v46, 0
    %v53 = vsel %vm48, %v47, 0
    %vm55 = vcmask 1041408
    %v57 = vsel %vm55, %v31, 0
    %59 = vmatprep.subr.mxu0 0.0
    %60 = vmatpush1.msra.mxu0 %v30
    %61 = vmatprep.subr.mxu0 0.0
    %62 = vmatpush1.msra.mxu0 %v57
    %63 = vmatprep.subr.mxu0 0.0
    %64 = vmatpush1.msra.mxu0 0.0
    %65 = vmatprep.subr.mxu0 0.0
    %66 = vmatpush1.msra.mxu0 0.0
    %67 = vmatprep.subr.mxu0 0.0
    %68 = vmatpush1.msra.mxu0 0.0
    %69 = vmatprep.subr.mxu0 0.0
    %70 = vmatpush1.msra.mxu0 0.0
    %71 = vmatprep.subr.mxu0 0.0
    %72 = vmatpush1.msra.mxu0 0.0
    %73 = vmatprep.subr.mxu0 0.0
    %74 = vmatpush1.msra.mxu0 0.0
    %75 = vmatprep.subr.mxu0 0.0
    %76 = vmatpush1.msra.mxu0 0.0
    %77 = vmatprep.subr.mxu0 0.0
    %78 = vmatpush1.msra.mxu0 0.0
    %79 = vmatprep.subr.mxu0 0.0
    %80 = vmatpush1.msra.mxu0 0.0
    %81 = vmatprep.subr.mxu0 0.0
    %82 = vmatpush1.msra.mxu0 0.0
    %83 = vmatprep.subr.mxu0 0.0
    %84 = vmatpush1.msra.mxu0 0.0
    %85 = vmatprep.subr.mxu0 0.0
    %86 = vmatpush1.msra.mxu0 0.0
    %87 = vmatprep.subr.mxu0 0.0
    %88 = vmatpush1.msra.mxu0 0.0
    %89 = vmatprep.subr.mxu0 0.0
    %90 = vmatpush1.msra.mxu0 0.0
    %91 = vmatprep.subr.mxu0 0.0
    %92 = vmatpush1.msra.mxu0 0.0
    %93 = vmatprep.subr.mxu0 0.0
    %94 = vmatpush1.msra.mxu0 0.0
    %95 = vmatprep.subr.mxu0 0.0
    %96 = vmatpush1.msra.mxu0 0.0
    %97 = vmatprep.subr.mxu0 0.0
    %98 = vmatpush1.msra.mxu0 0.0
    %99 = vmatprep.subr.mxu0 0.0
    %100 = vmatpush1.msra.mxu0 0.0
    %101 = vmatprep.subr.mxu0 0.0
    %102 = vmatpush1.msra.mxu0 0.0
    %103 = vmatprep.subr.mxu0 0.0
    %104 = vmatpush1.msra.mxu0 0.0
    %105 = vmatprep.subr.mxu0 0.0
    %106 = vmatpush1.msra.mxu0 0.0
    %107 = vmatprep.subr.mxu0 0.0
    %108 = vmatpush1.msra.mxu0 0.0
    %109 = vmatprep.subr.mxu0 0.0
    %110 = vmatpush1.msra.mxu0 0.0
    %111 = vmatprep.subr.mxu0 0.0
    %112 = vmatpush1.msra.mxu0 0.0
    %113 = vmatprep.subr.mxu0 0.0
    %114 = vmatpush1.msra.mxu0 0.0
    %115 = vmatprep.subr.mxu0 0.0
    %116 = vmatpush1.msra.mxu0 0.0
    %117 = vmatprep.subr.mxu0 0.0
    %118 = vmatpush1.msra.mxu0 0.0
    %119 = vmatprep.subr.mxu0 0.0
    %120 = vmatpush1.msra.mxu0 0.0
    %121 = vmatprep.subr.mxu0 0.0
    %122 = vmatpush1.msra.mxu0 0.0
    %123 = vmatprep.mubr.f32.mxu0 0.0
    %124 = vmatmul.mubr.f32.gmra.mrb[0].mxu0 %v50
    %v125 = vpop.f32.mrb[0].mxu0
    %v126 = vadd.f32 0.0, %v125
    %v127 = vpop.f32.mrb[0].mxu0
    %128 = vmatprep.mubr.f32.mxu0 0.0
    %129 = vmatmul.mubr.f32.gmra.mrb[0].mxu0 %v53
    %v130 = vpop.f32.mrb[0].mxu0
    %v131 = vadd.f32 0.0, %v130
    %v132 = vpop.f32.mrb[0].mxu0
    %133 = vdwg.mxu0
    %v134 = vsub.f32 %v28, %v126
    %v135 = vsub.f32 %v29, %v131
    %v136 = vmul.f32 %v134, %v134
    %v137 = vmul.f32 %v135, %v135
    %vm138 = vcmask 261120
    %v139 = vsel %vm138, %v136, 0.0
    %140 = vadd.xlane.f32.xlu0 %v139
    %v141 = vpop.xlane.xlu0 %140
    %v142 = vsel %vm138, %v137, 0.0
    %143 = vadd.xlane.f32.xlu0 %v142
    %v144 = vpop.xlane.xlu0 %143
    %v145 = vmax.f32 %v141, 1e-12
    %v146 = vmax.f32 %v144, 1e-12
    %v147 = vmin.f32 %v145, 1e+12
    %v148 = vmin.f32 %v146, 1e+12
    %s149 = smul.u32 0, 16
    %v150 = vlaneseq
    %v151 = vshrl.u32 %v150, 7
    %v152 = vadd.s32 %v151, 8
    %v153 = vstv %s149
    %v154 = vadd.s32 %v153, %v151
    %v155 = vadd.s32 %v153, %v152
    %vm156 = vcmp.lt.s32.totalorder %v154, 16
    %vm157 = vcmp.lt.s32.totalorder %v155, 16
    %v158 = vsel %vm156, %v147, 0.0
    %v159 = vsel %vm157, %v148, 0.0
    %vm160 = vcmask 7168
    %161 = vst.msk [vmem:[%s3] sm:$0xff] %vm160, %v158
    %162 = vst.msk [vmem:[%s3 + $0x8] sm:$0xff] %vm160, %v159
    // Predicated region
    $region18: #{tpu_custom_call.1} parent=1 // pred_check
      _
    $region19: #{tpu_custom_call.1} parent=1 // pred_check_branch
      %164 = sbr.rel (0) target = $region21
    $region20: #{tpu_custom_call.1} parent=1 // pred_region
      _
    $region21: #{tpu_custom_call.1} parent=1 // pred_fallthru
      _
    // Predicated region
    $region22: #{tpu_custom_call.1} parent=1 // pred_check
      _
    $region23: #{tpu_custom_call.1} parent=1 // pred_check_branch
      %166 = sbr.rel (0) target = $region25
    $region24: #{tpu_custom_call.1} parent=1 // pred_region
      _
    $region25: #{tpu_custom_call.1} parent=1 // pred_fallthru
      _
    %167 = vsyncpa [#allocation3], 1

</llo_original>
